<compile_context>
chip_gen: v7x
topology: tpu7x:2x2x1
jax: 0.10.0
libtpu: 0.0.40
codegen_flags: <defaults>
</compile_context>

<pallas_src>
import numpy as np
import jax
import jax.numpy as jnp
from jax.experimental import pallas as pl
from jax.experimental.pallas import tpu as pltpu


# ---------------------------------------------------------------------------
# Pallas kernel 1: tiled Linear  y = x @ w + b   (rows tiled, "parallel" grid)
# Used for: encoded_to_hidden precompute, teacher-forcing gate precompute,
# and the hoisted output projection.
# ---------------------------------------------------------------------------
def _linear_kernel(x_ref, w_ref, b_ref, o_ref):
    o_ref[...] = (
        jnp.dot(x_ref[...], w_ref[...], preferred_element_type=jnp.float32)
        + b_ref[...]
    )


def pallas_linear(x, w, b, block_m=512):
    M, K = x.shape
    N = w.shape[1]
    bm = min(block_m, M)           # bm == M (full dim) or a multiple of 8
    grid = (pl.cdiv(M, bm),)
    return pl.pallas_call(
        _linear_kernel,
        out_shape=jax.ShapeDtypeStruct((M, N), jnp.float32),
        grid=grid,
        in_specs=[
            pl.BlockSpec((bm, K), lambda i: (i, 0)),
            pl.BlockSpec((K, N), lambda i: (0, 0)),
            pl.BlockSpec((1, N), lambda i: (0, 0)),
        ],
        out_specs=pl.BlockSpec((bm, N), lambda i: (i, 0)),
        compiler_params=pltpu.CompilerParams(
            dimension_semantics=("parallel",)),
    )(x, w, b)


# ---------------------------------------------------------------------------
# Pallas kernel 2: the sequential attention + 2-layer GRU recurrence.
# Single invocation per batch tile; in-kernel pl.loop over decode steps.
# Emits per-step top-layer hidden states (output projection is hoisted out).
# ---------------------------------------------------------------------------
def pallas_attention_decoder_core(encoded_bte, encc_bth, mask_bt, gi_inp,
                                  w_h0f, w_ih0_ctx, w_ih1, w_hh1,
                                  w_score, b3, rnn_zero2,
                                  batch_block=None):
    B, T, E = encoded_bte.shape
    n_steps = gi_inp.shape[0]
    H = w_ih1.shape[0]
    n_layers = rnn_zero2.shape[0]
    assert n_layers == 2, "kernel is written for a 2-layer GRU stack"

    # batch tile: must equal B or be a multiple of 8 (sublane tiling rule)
    bB = B if batch_block is None else batch_block
    nb = pl.cdiv(B, bB)

    def kernel(enc_ref, encc_ref, mask_ref, gi_inp_ref,
               w_h0f_ref, w_ihc_ref, w_ih1_ref, w_hh1_ref,
               w_score_ref, b3_ref, rnn_zero_ref,
               h_out_ref,
               h0_ref, h1_ref):
        # ---- hoist all loop-invariant loads / broadcasts out of the recurrence ----
        encoded = enc_ref[...]                       # (bB, T, E)
        encc = encc_ref[...]                         # (bB, T, H)
        maskv = mask_ref[...]                        # (bB, T)  (b_score already folded in)
        w_h0f = w_h0f_ref[...]                       # (H, 4H) = [w_rec | w_hh0]
        w_ihc = w_ihc_ref[...]                       # (E, 3H)  context -> gates
        w_ih1 = w_ih1_ref[...]                       # (H, 3H)
        w_hh1 = w_hh1_ref[...]                       # (H, 3H)
        w_score3 = w_score_ref[...][None, :, :]      # (1, 1, H)
        b_all = b3_ref[...]                          # (3, 3H) = [b_hh0; b_ih1; b_hh1]
        b_hh0 = b_all[0:1]
        b_ih1 = b_all[1:2]
        b_hh1 = b_all[2:3]

        # rnn_state = rnn_zero_state.repeat(1, bs, 1)
        h0_ref[...] = jnp.broadcast_to(rnn_zero_ref[0:1, :], (bB, H))
        h1_ref[...] = jnp.broadcast_to(rnn_zero_ref[1:2, :], (bB, H))

        @pl.loop(0, n_steps)
        def _step(t):
            h0 = h0_ref[...]
            h1 = h1_ref[...]

            # ---------------- Attention (lane-dense, T on the lane axis) ----------
            # one h0 matmul gives both rec-state contribution and gh0
            h0cat = jnp.dot(h0, w_h0f, preferred_element_type=jnp.float32)  # (bB, 4H)
            rec = h0cat[:, :H]                                              # (bB, H)
            gh0 = h0cat[:, H:] + b_hh0                                      # (bB, 3H)

            hidden = jnp.tanh(encc + rec[:, None, :])                       # (bB, T, H)
            scores = jnp.sum(hidden * w_score3, axis=-1) + maskv            # (bB, T)
            m = jnp.max(scores, axis=-1, keepdims=True)
            ex = jnp.exp(scores - m)
            att = ex / jnp.sum(ex, axis=-1, keepdims=True)                  # (bB, T)

            # context = sum_t att[b,t] * encoded[b,t,:]  (batched matmul on the MXU)
            context = jnp.einsum('bqt,bte->bqe', att[:, None, :], encoded,
                                 preferred_element_type=jnp.float32)[:, 0, :]  # (bB, E)

            # ---------------- 2-layer GRU cell ------------------------------------
            # teacher-forcing input contribution was precomputed outside the loop
            gi0 = gi_inp_ref[t] + jnp.dot(context, w_ihc,
                                          preferred_element_type=jnp.float32)  # (bB, 3H)
            r0 = jax.nn.sigmoid(gi0[:, :H] + gh0[:, :H])
            z0 = jax.nn.sigmoid(gi0[:, H:2 * H] + gh0[:, H:2 * H])
            n0 = jnp.tanh(gi0[:, 2 * H:] + r0 * gh0[:, 2 * H:])
            h0_new = (1.0 - z0) * n0 + z0 * h0

            gi1 = jnp.dot(h0_new, w_ih1, preferred_element_type=jnp.float32) + b_ih1
            gh1 = jnp.dot(h1, w_hh1, preferred_element_type=jnp.float32) + b_hh1
            r1 = jax.nn.sigmoid(gi1[:, :H] + gh1[:, :H])
            z1 = jax.nn.sigmoid(gi1[:, H:2 * H] + gh1[:, H:2 * H])
            n1 = jnp.tanh(gi1[:, 2 * H:] + r1 * gh1[:, 2 * H:])
            h1_new = (1.0 - z1) * n1 + z1 * h1

            h0_ref[...] = h0_new
            h1_ref[...] = h1_new
            h_out_ref[t] = h1_new          # top-layer output for this step

    in_specs = [
        pl.BlockSpec((bB, T, E), lambda b: (b, 0, 0)),        # encoded (B,T,E)
        pl.BlockSpec((bB, T, H), lambda b: (b, 0, 0)),        # enc_contrib (B,T,H)
        pl.BlockSpec((bB, T), lambda b: (b, 0)),              # mask (+ b_score) (B,T)
        pl.BlockSpec((n_steps, bB, 3 * H), lambda b: (0, b, 0)),  # precomputed gi_inp
        pl.BlockSpec((H, 4 * H), lambda b: (0, 0)),           # [w_rec | w_hh0]
        pl.BlockSpec((E, 3 * H), lambda b: (0, 0)),           # w_ih0 (context rows)
        pl.BlockSpec((H, 3 * H), lambda b: (0, 0)),           # w_ih1
        pl.BlockSpec((H, 3 * H), lambda b: (0, 0)),           # w_hh1
        pl.BlockSpec((1, H), lambda b: (0, 0)),               # w_score
        pl.BlockSpec((3, 3 * H), lambda b: (0, 0)),           # [b_hh0; b_ih1; b_hh1]
        pl.BlockSpec((n_layers, H), lambda b: (0, 0)),        # rnn_zero_state
    ]

    # TODO(synk): for very long T / large E,H on v7x (64 MiB VMEM) this should switch
    # to a T-chunked online-softmax (flash-style) attention instead of keeping the
    # full (B,T,E)+(B,T,H) slabs resident.
    return pl.pallas_call(
        kernel,
        out_shape=jax.ShapeDtypeStruct((n_steps, B, H), jnp.float32),
        grid=(nb,),
        in_specs=in_specs,
        out_specs=pl.BlockSpec((n_steps, bB, H), lambda b: (0, b, 0)),
        scratch_shapes=[
            pltpu.VMEM((bB, H), jnp.float32),   # GRU hidden, layer 0
            pltpu.VMEM((bB, H), jnp.float32),   # GRU hidden, layer 1
        ],
        compiler_params=pltpu.CompilerParams(
            dimension_semantics=("parallel",),   # batch tiles are independent
            vmem_limit_bytes=64 * 1024 * 1024),
    )(encoded_bte, encc_bth, mask_bt, gi_inp,
      w_h0f, w_ih0_ctx, w_ih1, w_hh1, w_score, b3, rnn_zero2)


# ---------------------------------------------------------------------------
# Full AttentionDecoderRNN.forward (glue: embedding gather, mask build,
# parallel pre/post matmuls via the tiled linear kernel, loss)
# ---------------------------------------------------------------------------
def attention_decoder_forward(params, encoded, encoded_lens, texts, text_lens,
                              num_classes_plus_1):
    T, B, E = encoded.shape
    H = params["w_rec"].shape[0]
    C = params["w_out"].shape[1]
    EOS = num_classes_plus_1 - 1

    # texts -> cat zero column, write EOS at text_lens[b]
    texts_ext = jnp.concatenate([texts, jnp.zeros((B, 1), texts.dtype)], axis=1)
    texts_ext = texts_ext.at[jnp.arange(B), text_lens].set(EOS)
    n_steps = texts_ext.shape[1]

    # embedding lookup (gather) -- plain JAX glue
    embedded = params["embedding"][texts_ext.T].astype(jnp.float32)   # (n_steps, B, H)
    # teacher forcing: inputs at step t = embedded[t-1], zeros at step 0
    inputs_seq = jnp.concatenate(
        [jnp.zeros((1, B, H), jnp.float32), embedded[:-1]], axis=0)   # (n_steps, B, H)

    # init_attention: mask = (get_mask - 1) * 1e5 ; b_score folded in (shift-invariant)
    valid = (jnp.arange(T)[None, :] < encoded_lens[:, None]).astype(jnp.float32)  # (B,T)
    mask_bt = (valid - 1.0) * 100000.0 + params["b_score"][0, 0]

    # lane-friendly (batch-major) encoded layout
    encoded_bte = jnp.transpose(encoded, (1, 0, 2))                   # (B, T, E)

    # init_attention: encoded_to_hidden (tiled Pallas linear)
    enc_contrib_bth = pallas_linear(
        encoded_bte.reshape(B * T, E), params["w_enc"], params["b_enc"]
    ).reshape(B, T, H)

    # teacher-forcing input-gate contribution, hoisted off the serial path
    gi_inp = pallas_linear(
        inputs_seq.reshape(n_steps * B, H), params["w_ih0"][:H], params["b_ih0"]
    ).reshape(n_steps, B, 3 * H)

    # packed weights for the recurrent kernel
    w_h0f = jnp.concatenate([params["w_rec"], params["w_hh0"]], axis=1)   # (H, 4H)
    w_ih0_ctx = params["w_ih0"][H:]                                       # (E, 3H)
    b3 = jnp.concatenate(
        [params["b_hh0"], params["b_ih1"], params["b_hh1"]], axis=0)      # (3, 3H)
    rnn_zero2 = params["rnn_zero"][:, 0, :]                               # (2, H)

    # sequential attention + GRU recurrence -> per-step hidden states
    h_all = pallas_attention_decoder_core(
        encoded_bte, enc_contrib_bth, mask_bt, gi_inp,
        w_h0f, w_ih0_ctx, params["w_ih1"], params["w_hh1"],
        params["w_score"], b3, rnn_zero2)                                 # (n_steps, B, H)

    # hoisted output projection: one lane-dense matmul (C padded to 128 lanes)
    Cp = ((C + 127) // 128) * 128
    w_out_p = jnp.pad(params["w_out"], ((0, 0), (0, Cp - C)))
    b_out_p = jnp.pad(params["b_out"], ((0, 0), (0, Cp - C)))
    logits_p = pallas_linear(h_all.reshape(n_steps * B, H), w_out_p, b_out_p)
    logits_tbc = logits_p[:, :C].reshape(n_steps, B, C)

    # loss: cross_entropy(logits.permute(1,0,2).view(B*L,C), texts.view(-1), ignore_index=0)
    logits_flat = jnp.transpose(logits_tbc, (1, 0, 2)).reshape(B * n_steps, C)
    tgt = texts_ext.reshape(B * n_steps)
    logp = jax.nn.log_softmax(logits_flat, axis=-1)
    nll = -jnp.take_along_axis(logp, tgt[:, None], axis=1)[:, 0]
    w = (tgt != 0).astype(jnp.float32)                                    # ignore_index=0
    loss = jnp.sum(nll * w) / jnp.maximum(jnp.sum(w), 1.0)
    return loss, logits_tbc


# ---------------------------------------------------------------------------
# Pure-JAX reference (same math, no Pallas) for validation
# ---------------------------------------------------------------------------
def reference_forward(params, encoded, encoded_lens, texts, text_lens,
                      num_classes_plus_1):
    T, B, E = encoded.shape
    H = params["w_rec"].shape[0]
    EOS = num_classes_plus_1 - 1
    texts_ext = jnp.concatenate([texts, jnp.zeros((B, 1), texts.dtype)], axis=1)
    texts_ext = texts_ext.at[jnp.arange(B), text_lens].set(EOS)
    n_steps = texts_ext.shape[1]
    embedded = params["embedding"][texts_ext.T]
    valid = (jnp.arange(T)[:, None] < encoded_lens[None, :]).astype(jnp.float32)
    mask = (valid - 1.0) * 100000.0
    enc_contrib = jnp.einsum("tbe,eh->tbh", encoded, params["w_enc"]) + params["b_enc"][0]

    h = jnp.broadcast_to(params["rnn_zero"], (2, B, H))
    inputs = jnp.zeros((B, H), jnp.float32)
    logits_steps = []
    for t in range(n_steps):
        rec = h[0] @ params["w_rec"]
        hidden = jnp.tanh(enc_contrib + rec[None])
        scores = jnp.sum(hidden * params["w_score"][0][None, None, :], axis=-1)
        scores = scores + params["b_score"][0, 0] + mask
        att = jax.nn.softmax(scores, axis=0)
        context = jnp.sum(att[:, :, None] * encoded, axis=0)
        gi0 = (inputs @ params["w_ih0"][:H] + context @ params["w_ih0"][H:]
               + params["b_ih0"][0])
        gh0 = h[0] @ params["w_hh0"] + params["b_hh0"][0]
        r0 = jax.nn.sigmoid(gi0[:, :H] + gh0[:, :H])
        z0 = jax.nn.sigmoid(gi0[:, H:2 * H] + gh0[:, H:2 * H])
        n0 = jnp.tanh(gi0[:, 2 * H:] + r0 * gh0[:, 2 * H:])
        h0n = (1.0 - z0) * n0 + z0 * h[0]
        gi1 = h0n @ params["w_ih1"] + params["b_ih1"][0]
        gh1 = h[1] @ params["w_hh1"] + params["b_hh1"][0]
        r1 = jax.nn.sigmoid(gi1[:, :H] + gh1[:, :H])
        z1 = jax.nn.sigmoid(gi1[:, H:2 * H] + gh1[:, H:2 * H])
        n1 = jnp.tanh(gi1[:, 2 * H:] + r1 * gh1[:, 2 * H:])
        h1n = (1.0 - z1) * n1 + z1 * h[1]
        h = jnp.stack([h0n, h1n])
        logits_steps.append(h1n @ params["w_out"] + params["b_out"][0])
        inputs = embedded[t]
    logits_tbc = jnp.stack(logits_steps)
    C = logits_tbc.shape[-1]
    logits_flat = jnp.transpose(logits_tbc, (1, 0, 2)).reshape(B * n_steps, C)
    tgt = texts_ext.reshape(B * n_steps)
    logp = jax.nn.log_softmax(logits_flat, axis=-1)
    nll = -jnp.take_along_axis(logp, tgt[:, None], axis=1)[:, 0]
    w = (tgt != 0).astype(jnp.float32)
    loss = jnp.sum(nll * w) / jnp.maximum(jnp.sum(w), 1.0)
    return loss, logits_tbc


# ---------------------------------------------------------------------------
# Deterministic synthetic parameter init (shapes per the module __init__).
# Linear weights are stored pre-transposed (in_features, out_features).
# ---------------------------------------------------------------------------
def init_params(key, E, H, C, n_layers=2):
    ks = jax.random.split(key, 16)
    s = 0.1
    return {
        "embedding": jax.random.normal(ks[0], (C, H), jnp.float32) * s,
        "w_enc":  jax.random.normal(ks[1], (E, H), jnp.float32) * s,      # encoded_to_hidden
        "b_enc":  jax.random.normal(ks[2], (1, H), jnp.float32) * s,
        "w_rec":  jax.random.normal(ks[3], (H, H), jnp.float32) * s,      # rec_state_to_hidden (no bias)
        # NOTE: the module zeroes hidden_to_score.weight in __init__; small random
        # values exercise the attention path numerically (zeros also work).
        "w_score": jax.random.normal(ks[4], (1, H), jnp.float32) * s,
        "b_score": jax.random.normal(ks[5], (1, 1), jnp.float32) * s,
        "w_ih0":  jax.random.normal(ks[6], (H + E, 3 * H), jnp.float32) * s,
        "w_hh0":  jax.random.normal(ks[7], (H, 3 * H), jnp.float32) * s,
        "b_ih0":  jax.random.normal(ks[8], (1, 3 * H), jnp.float32) * s,
        "b_hh0":  jax.random.normal(ks[9], (1, 3 * H), jnp.float32) * s,
        "w_ih1":  jax.random.normal(ks[10], (H, 3 * H), jnp.float32) * s,
        "w_hh1":  jax.random.normal(ks[11], (H, 3 * H), jnp.float32) * s,
        "b_ih1":  jax.random.normal(ks[12], (1, 3 * H), jnp.float32) * s,
        "b_hh1":  jax.random.normal(ks[13], (1, 3 * H), jnp.float32) * s,
        "w_out":  jax.random.normal(ks[14], (H, C), jnp.float32) * s,     # output_to_logits
        "b_out":  jax.random.normal(ks[15], (1, C), jnp.float32) * s,
        "rnn_zero": jnp.zeros((n_layers, 1, H), jnp.float32),             # rnn_zero_state
    }


if __name__ == "__main__":
    # small shapes consistent with the module's forward
    B, T, E, H = 2, 16, 32, 32        # batch, max encoded len, encoded_size, hidden_size
    num_classes = 11                  # module uses num_classes + 1 (EOS)
    C = num_classes + 1
    L = 8                             # max text length (before EOS column)
    n_layers = 2
    # dropout_p = 0.0 (self.dropout unused in forward; GRU inter-layer dropout off)

    key = jax.random.PRNGKey(0)
    k_enc, k_txt, k_par = jax.random.split(key, 3)

    encoded = jax.random.normal(k_enc, (T, B, E), jnp.float32)
    encoded_lens = jnp.array([T, 11], jnp.int32)
    texts = jax.random.randint(k_txt, (B, L), 1, num_classes).astype(jnp.int32)
    text_lens = jnp.array([L, 5], jnp.int32)
    # positions beyond text_lens are padding id 0 (ignored by the loss, ignore_index=0)
    texts = jnp.where(jnp.arange(L)[None, :] < text_lens[:, None], texts, 0)

    params = init_params(k_par, E, H, C, n_layers)

    loss, logits = attention_decoder_forward(params, encoded, encoded_lens,
                                             texts, text_lens, C)
    loss = jax.block_until_ready(loss)
    logits = jax.block_until_ready(logits)

    ref_loss, ref_logits = reference_forward(params, encoded, encoded_lens,
                                             texts, text_lens, C)

    assert np.isfinite(float(loss))
    assert np.allclose(np.asarray(logits), np.asarray(ref_logits),
                       atol=2e-2, rtol=2e-2), "logits mismatch vs pure-JAX reference"
    assert np.allclose(float(loss), float(ref_loss),
                       atol=2e-2, rtol=2e-2), "loss mismatch vs pure-JAX reference"

    # TODO(synk): LM-fused beam-search decode() path (pyfst graph search) has no Pallas equivalent.
    print("KERNEL_OK")
</pallas_src>

<mosaic_0001>
module attributes {stable_mosaic.version = 11 : i64} {
  func.func @_linear_kernel(%arg0: i32, %arg1: memref<32x32xf32, #tpu.memory_space<vmem>>, %arg2: memref<32x32xf32, #tpu.memory_space<vmem>>, %arg3: memref<1x32xf32, #tpu.memory_space<vmem>>, %arg4: memref<32x32xf32, #tpu.memory_space<vmem>>) attributes {dimension_semantics = [#tpu.dimension_semantics<parallel>], iteration_bounds = array<i64: 1>, scalar_prefetch = 0 : i64, scratch_operands = 0 : i64, tpu.core_type = #tpu.core_type<tc>, window_params = [{transform_indices = @transform_0, window_bounds = array<i64: 32, 32>}, {pipeline_mode = #tpu.pipeline_mode<synchronous>, transform_indices = @transform_1, window_bounds = array<i64: 32, 32>}, {pipeline_mode = #tpu.pipeline_mode<synchronous>, transform_indices = @transform_2, window_bounds = array<i64: 1, 32>}, {transform_indices = @transform_3, window_bounds = array<i64: 32, 32>}]} {
    %c0 = arith.constant 0 : index
    %c0_0 = arith.constant 0 : index
    %0 = vector.load %arg1[%c0, %c0_0] : memref<32x32xf32, #tpu.memory_space<vmem>>, vector<32x32xf32>
    %c0_1 = arith.constant 0 : index
    %c0_2 = arith.constant 0 : index
    %1 = vector.load %arg2[%c0_1, %c0_2] : memref<32x32xf32, #tpu.memory_space<vmem>>, vector<32x32xf32>
    %cst = arith.constant dense<0.000000e+00> : vector<32x32xf32>
    %2 = tpu.matmul %0, %1, %cst {dimension_numbers = #tpu.dot_dimension_numbers<[1], [0], [0], [1], [0, 0, 1, 1], [], []>} : vector<32x32xf32>, vector<32x32xf32>, vector<32x32xf32> -> vector<32x32xf32>
    %c0_3 = arith.constant 0 : index
    %c0_4 = arith.constant 0 : index
    %3 = vector.load %arg3[%c0_3, %c0_4] : memref<1x32xf32, #tpu.memory_space<vmem>>, vector<1x32xf32>
    %4 = vector.broadcast %3 : vector<1x32xf32> to vector<32x32xf32>
    %5 = arith.addf %2, %4 : vector<32x32xf32>
    %c0_5 = arith.constant 0 : index
    %c0_6 = arith.constant 0 : index
    %6 = vector.load %arg4[%c0_5, %c0_6] : memref<32x32xf32, #tpu.memory_space<vmem>>, vector<32x32xf32>
    tpu.vector_store %arg4[%c0_5, %c0_6], %5 {strides = array<i32>} : memref<32x32xf32, #tpu.memory_space<vmem>>, vector<32x32xf32>,
    return
  }
  func.func @transform_0(%arg0: i32) -> (i32, i32) {
    %c0_i32 = arith.constant 0 : i32
    %c0_i32_0 = arith.constant 0 : i32
    return %arg0, %c0_i32 : i32, i32
  }
  func.func @transform_1(%arg0: i32) -> (i32, i32) {
    %c0_i32 = arith.constant 0 : i32
    %c0_i32_0 = arith.constant 0 : i32
    %c0_i32_1 = arith.constant 0 : i32
    return %c0_i32, %c0_i32_0 : i32, i32
  }
  func.func @transform_2(%arg0: i32) -> (i32, i32) {
    %c0_i32 = arith.constant 0 : i32
    %c0_i32_0 = arith.constant 0 : i32
    %c0_i32_1 = arith.constant 0 : i32
    return %c0_i32, %c0_i32_0 : i32, i32
  }
  func.func @transform_3(%arg0: i32) -> (i32, i32) {
    %c0_i32 = arith.constant 0 : i32
    %c0_i32_0 = arith.constant 0 : i32
    return %arg0, %c0_i32 : i32, i32
  }
}

</mosaic_0001>

<llo_original>
// kernel: tpu_custom_call.1
$region0: #{tpu_custom_call.1}
  #allocation0 [shape = 'u32[]', space=smem, size = 0x4, offset = 0x4, fixed_abs, tag = 'smem constant byte address 0x4 - core index']
  #allocation1 [shape = 'u32[144,128]{1,0:T(1,128)}', space=vmem, size = 0x12000, scoped, tag = 'internal scratch']
  %s0 = inlined_call_operand.hbm [shape: f32[32,32], index: 0, kind: input, shape index: {}]
  %s1 = inlined_call_operand.hbm [shape: f32[32,32], index: 1, kind: input, shape index: {}]
  %s2 = inlined_call_operand.vmem [shape: f32[1,32], index: 2, kind: input, shape index: {}]
  %s3 = inlined_call_operand.hbm [shape: f32[32,32], index: 3, kind: output, shape index: {}]
  %s4 = sld [smem:[#allocation0]]
  $region30: #{tpu_custom_call.1} parent=0
    _
  %s6 = ssub.s32 1, %s4
  %s7 = scalar_select 0, %s6, %s4
  $region1: #{tpu_custom_call.1} parent=0
    #allocation2 [shape = 'u8[16384]{0}', space=vmem, size = 0x4000, scoped, tag = 'input window, operand 0, single buffered']
    #allocation3 [shape = 's32[1]{0}', space=sflag, size = 0x4, scoped, tag = 'scoped memory for tpu_custom_call.1']
    #allocation4 [shape = 's32[1]{0}', space=sflag, size = 0x4, scoped, tag = 'scoped memory for tpu_custom_call.1']
    #allocation5 [shape = 'u8[16384]{0}', space=vmem, size = 0x4000, scoped, tag = 'input window, operand 1, single buffered']
    #allocation6 [shape = 's32[1]{0}', space=sflag, size = 0x4, scoped, tag = 'scoped memory for tpu_custom_call.1']
    #allocation7 [shape = 'u8[16384]{0}', space=vmem, size = 0x4000, scoped, tag = 'output window, operand 0, single buffered']
    %8 = vsyncpa [#allocation3], 0
    %9 = vsyncpa [#allocation6], 0
    %10 = vsyncpa [#allocation4], 0
    // Predicated region
    $region2: #{tpu_custom_call.1} parent=1 // pred_check
      _
    $region3: #{tpu_custom_call.1} parent=1 // pred_check_branch
      %12 = sbr.rel (0) target = $region5
    $region4: #{tpu_custom_call.1} parent=1 // pred_region
      %s14 = ssub.s32 512, 512
      %15 = vsyncadd [#allocation3], %s14
      %s16 = sshll.u32 [#allocation2], 4
      %s17 = int_to_ptr.vmem [resolvable:$true] %s16
      %22 = dma.hbm_to_vmem [thread:$0]  %s0, 512, %s17, [#allocation3], 128, 128, 8
    $region5: #{tpu_custom_call.1} parent=1 // pred_fallthru
      _
    // Predicated region
    $region6: #{tpu_custom_call.1} parent=1 // pred_check
      _
    $region7: #{tpu_custom_call.1} parent=1 // pred_check_branch
      %24 = sbr.rel (0) target = $region9
    $region8: #{tpu_custom_call.1} parent=1 // pred_region
      %s26 = ssub.s32 512, 512
      %27 = vsyncadd [#allocation6], %s26
      %s28 = sshll.u32 [#allocation5], 4
      %s29 = int_to_ptr.vmem [resolvable:$true] %s28
      %34 = dma.hbm_to_vmem [thread:$0]  %s1, 512, %s29, [#allocation6], 128, 128, 8
    $region9: #{tpu_custom_call.1} parent=1 // pred_fallthru
      _
    // Predicated region
    $region10: #{tpu_custom_call.1} parent=1 // pred_check
      _
    $region11: #{tpu_custom_call.1} parent=1 // pred_check_branch
      %36 = sbr.rel (0) target = $region13
    $region12: #{tpu_custom_call.1} parent=1 // pred_region
      _
    $region13: #{tpu_custom_call.1} parent=1 // pred_fallthru
      _
    // Predicated region
    $region14: #{tpu_custom_call.1} parent=1 // pred_check
      _
    $region15: #{tpu_custom_call.1} parent=1 // pred_check_branch
      %38 = sbr.rel (0) target = $region17
    $region16: #{tpu_custom_call.1} parent=1 // pred_region
      %39 = dma.done [#allocation3], 512
    $region17: #{tpu_custom_call.1} parent=1 // pred_fallthru
      _
    // Predicated region
    $region18: #{tpu_custom_call.1} parent=1 // pred_check
      _
    $region19: #{tpu_custom_call.1} parent=1 // pred_check_branch
      %41 = sbr.rel (0) target = $region21
    $region20: #{tpu_custom_call.1} parent=1 // pred_region
      %42 = dma.done [#allocation6], 512
    $region21: #{tpu_custom_call.1} parent=1 // pred_fallthru
      _
    %v43 = vld [vmem:[#allocation2] sm:$0xff]
    %v44 = vld [vmem:[#allocation2 + $0x8] sm:$0xff]
    %v45 = vld [vmem:[#allocation2 + $0x10] sm:$0xff]
    %v46 = vld [vmem:[#allocation2 + $0x18] sm:$0xff]
    %v47 = vld [vmem:[#allocation5] sm:$0xff]
    %v48 = vld [vmem:[#allocation5 + $0x8] sm:$0xff]
    %v49 = vld [vmem:[#allocation5 + $0x10] sm:$0xff]
    %v50 = vld [vmem:[#allocation5 + $0x18] sm:$0xff]
    %v51 = vld [vmem:[%s2] sm:$0x1]
    %v53 = vlaneseq
    %v54 = vshrl.u32 %v53, 7
    %v55 = vsub.s32 0, %v54
    %v56 = vrot.slane %v51, %v55
    %vm58 = vcmask 261120
    %v60 = vsel %vm58, %v43, 0
    %v63 = vsel %vm58, %v44, 0
    %v66 = vsel %vm58, %v45, 0
    %v69 = vsel %vm58, %v46, 0
    %71 = vmatprep.subr.mxu0 0.0
    %72 = vmatpush1.msra.mxu0 %v47
    %73 = vmatprep.subr.mxu0 0.0
    %74 = vmatpush1.msra.mxu0 %v48
    %75 = vmatprep.subr.mxu0 0.0
    %76 = vmatpush1.msra.mxu0 %v49
    %77 = vmatprep.subr.mxu0 0.0
    %78 = vmatpush1.msra.mxu0 %v50
    %79 = vmatprep.subr.mxu0 0.0
    %80 = vmatpush1.msra.mxu0 0.0
    %81 = vmatprep.subr.mxu0 0.0
    %82 = vmatpush1.msra.mxu0 0.0
    %83 = vmatprep.subr.mxu0 0.0
    %84 = vmatpush1.msra.mxu0 0.0
    %85 = vmatprep.subr.mxu0 0.0
    %86 = vmatpush1.msra.mxu0 0.0
    %87 = vmatprep.subr.mxu0 0.0
    %88 = vmatpush1.msra.mxu0 0.0
    %89 = vmatprep.subr.mxu0 0.0
    %90 = vmatpush1.msra.mxu0 0.0
    %91 = vmatprep.subr.mxu0 0.0
    %92 = vmatpush1.msra.mxu0 0.0
    %93 = vmatprep.subr.mxu0 0.0
    %94 = vmatpush1.msra.mxu0 0.0
    %95 = vmatprep.subr.mxu0 0.0
    %96 = vmatpush1.msra.mxu0 0.0
    %97 = vmatprep.subr.mxu0 0.0
    %98 = vmatpush1.msra.mxu0 0.0
    %99 = vmatprep.subr.mxu0 0.0
    %100 = vmatpush1.msra.mxu0 0.0
    %101 = vmatprep.subr.mxu0 0.0
    %102 = vmatpush1.msra.mxu0 0.0
    %103 = vmatprep.subr.mxu0 0.0
    %104 = vmatpush1.msra.mxu0 0.0
    %105 = vmatprep.subr.mxu0 0.0
    %106 = vmatpush1.msra.mxu0 0.0
    %107 = vmatprep.subr.mxu0 0.0
    %108 = vmatpush1.msra.mxu0 0.0
    %109 = vmatprep.subr.mxu0 0.0
    %110 = vmatpush1.msra.mxu0 0.0
    %111 = vmatprep.subr.mxu0 0.0
    %112 = vmatpush1.msra.mxu0 0.0
    %113 = vmatprep.subr.mxu0 0.0
    %114 = vmatpush1.msra.mxu0 0.0
    %115 = vmatprep.subr.mxu0 0.0
    %116 = vmatpush1.msra.mxu0 0.0
    %117 = vmatprep.subr.mxu0 0.0
    %118 = vmatpush1.msra.mxu0 0.0
    %119 = vmatprep.subr.mxu0 0.0
    %120 = vmatpush1.msra.mxu0 0.0
    %121 = vmatprep.subr.mxu0 0.0
    %122 = vmatpush1.msra.mxu0 0.0
    %123 = vmatprep.subr.mxu0 0.0
    %124 = vmatpush1.msra.mxu0 0.0
    %125 = vmatprep.subr.mxu0 0.0
    %126 = vmatpush1.msra.mxu0 0.0
    %127 = vmatprep.subr.mxu0 0.0
    %128 = vmatpush1.msra.mxu0 0.0
    %129 = vmatprep.subr.mxu0 0.0
    %130 = vmatpush1.msra.mxu0 0.0
    %131 = vmatprep.subr.mxu0 0.0
    %132 = vmatpush1.msra.mxu0 0.0
    %133 = vmatprep.subr.mxu0 0.0
    %134 = vmatpush1.msra.mxu0 0.0
    %135 = vmatprep.mubr.f32.mxu0 0.0
    %136 = vmatmul.mubr.f32.gmra.mrb[0].mxu0 %v60
    %v137 = vpop.f32.mrb[0].mxu0
    %v138 = vadd.f32 %v56, %v137
    %v139 = vpop.f32.mrb[0].mxu0
    %140 = vmatprep.mubr.f32.mxu0 0.0
    %141 = vmatmul.mubr.f32.gmra.mrb[0].mxu0 %v63
    %v142 = vpop.f32.mrb[0].mxu0
    %v143 = vadd.f32 %v56, %v142
    %v144 = vpop.f32.mrb[0].mxu0
    %145 = vmatprep.mubr.f32.mxu0 0.0
    %146 = vmatmul.mubr.f32.gmra.mrb[0].mxu0 %v66
    %v147 = vpop.f32.mrb[0].mxu0
    %v148 = vadd.f32 %v56, %v147
    %v149 = vpop.f32.mrb[0].mxu0
    %150 = vmatprep.mubr.f32.mxu0 0.0
    %151 = vmatmul.mubr.f32.gmra.mrb[0].mxu0 %v69
    %v152 = vpop.f32.mrb[0].mxu0
    %v153 = vadd.f32 %v56, %v152
    %v154 = vpop.f32.mrb[0].mxu0
    %155 = vdwg.mxu0
    %156 = vst.msk [vmem:[#allocation7] sm:$0xff] %vm58, %v138
    %157 = vst.msk [vmem:[#allocation7 + $0x8] sm:$0xff] %vm58, %v143
    %158 = vst.msk [vmem:[#allocation7 + $0x10] sm:$0xff] %vm58, %v148
    %159 = vst.msk [vmem:[#allocation7 + $0x18] sm:$0xff] %vm58, %v153
    // Predicated region
    $region22: #{tpu_custom_call.1} parent=1 // pred_check
      _
    $region23: #{tpu_custom_call.1} parent=1 // pred_check_branch
      %161 = sbr.rel (0) target = $region25
    $region24: #{tpu_custom_call.1} parent=1 // pred_region
      %s163 = ssub.s32 512, 512
      %164 = vsyncadd [#allocation4], %s163
      %s165 = sshll.u32 [#allocation7], 4
      %s166 = int_to_ptr.vmem [resolvable:$true] %s165
      %171 = dma.vmem_to_hbm [thread:$0]  %s166, 512, %s3, [#allocation4], 128, 128, 8
    $region25: #{tpu_custom_call.1} parent=1 // pred_fallthru
      _
    // Predicated region
    $region26: #{tpu_custom_call.1} parent=1 // pred_check
      _
    $region27: #{tpu_custom_call.1} parent=1 // pred_check_branch
      %173 = sbr.rel (0) target = $region29
    $region28: #{tpu_custom_call.1} parent=1 // pred_region
      %174 = dma.done [#allocation4], 512
    $region29: #{tpu_custom_call.1} parent=1 // pred_fallthru
      _
    %175 = vsyncpa [#allocation3], 1
    %176 = vsyncpa [#allocation6], 1
    %177 = vsyncpa [#allocation4], 1

</llo_original>
